<compile_context>
chip_gen: v6e
topology: v6e:2x2x1
jax: 0.10.0
libtpu: 0.0.40
codegen_flags: <defaults>
</compile_context>

<pallas_src>
import functools

import numpy as np
import jax
import jax.numpy as jnp
from jax.experimental import pallas as pl
from jax.experimental.pallas import tpu as pltpu

C = 4          # global cluster-gap constant `C` from the reference code (even)
NEG = -1e30    # NOTE: doubles as lane/sublane padding and masked-max sentinel;
POS = 1e30     #       real membrane potentials must stay > -1e29.


def _round_up(x, m):
    return ((x + m - 1) // m) * m


def _atca_kernel(bandp_ref, bandn_ref, tril_ref, v_ref, lab_ref,
                 loss_ref, spike_ref, *, T, c_gap, max_clusters, mc_pad):
    f32 = jnp.float32
    T_pad, L = v_ref.shape

    sub_i = jax.lax.broadcasted_iota(jnp.int32, (T_pad, L), 0)   # time index
    sub = sub_i.astype(f32)
    valid = sub_i < T
    big = f32(T_pad)                       # sentinel "no index"

    V = jnp.where(valid, v_ref[...], NEG)  # padded time rows forced negative
    labels = lab_ref[...]                  # (1, L)

    spike = V >= 0.0
    spike_bf = spike.astype(jnp.bfloat16)  # exact 0/1 -> MXU operand

    # ---- spike-neighbourhood counts via constant band matmuls (MXU) --------
    prev_cnt = jnp.dot(bandp_ref[...], spike_bf, preferred_element_type=f32)
    near = jnp.dot(bandn_ref[...], spike_bf, preferred_element_type=f32)

    # cluster start := spike with no spike in the previous C steps
    cluster_start = spike & (prev_cnt < 0.5)
    cs_bf = cluster_start.astype(jnp.bfloat16)

    # cid[t] = #(cluster starts at times <= t)  (exact small ints, f32 acc)
    cid = jnp.dot(tril_ref[...], cs_bf, preferred_element_type=f32)
    num_cluster = cid[T_pad - 1:T_pad, :]          # (1, L) total cluster count
    spike_ref[...] = num_cluster

    # ---- mask0: any spike within |dt| <= C (padding always masked) ----------
    mask0 = (near > 0.5) | jnp.logical_not(valid)
    unmasked0 = jnp.sum(jnp.where(mask0, 0.0, 1.0), axis=0, keepdims=True)

    # deterministic replacement for the reference's random spike pick
    first_idx = jnp.min(jnp.where(spike, sub, big), axis=0, keepdims=True)
    v_first = jnp.sum(jnp.where(sub == first_idx, V, 0.0),
                      axis=0, keepdims=True)

    # max over unmasked region before the argmax window is applied
    M0 = jnp.max(jnp.where(mask0, NEG, V), axis=0, keepdims=True)

    # argmax of the full trace (first occurrence), +-C/2 window
    vmax = jnp.max(V, axis=0, keepdims=True)
    tmax = jnp.min(jnp.where(V == vmax, sub, big), axis=0, keepdims=True)
    half = f32(c_gap // 2)
    lo = jnp.maximum(tmax - half, 0.0)
    hi = jnp.minimum(tmax + half, f32(T - 1))
    in_win = (sub >= lo) & (sub <= hi)
    mask1 = mask0 | in_win
    unmasked1 = jnp.sum(jnp.where(mask1, 0.0, 1.0), axis=0, keepdims=True)
    M1 = jnp.max(jnp.where(mask1, NEG, V), axis=0, keepdims=True)

    # ---- per-cluster maxima -> sublane slots 0..max_clusters-1 --------------
    cid_s = jnp.where(spike, cid, 0.0)             # precomputed once (item 6)
    mc_sub = jax.lax.broadcasted_iota(jnp.int32, (mc_pad, L), 0)
    cvals = jnp.full((mc_pad, L), POS, dtype=f32)  # absent cluster = POS
    for c in range(max_clusters):
        in_c = cid_s == f32(c + 1)
        cm = jnp.max(jnp.where(in_c, V, NEG), axis=0, keepdims=True)
        cm = jnp.where(cm < -1e29, POS, cm)
        cvals = jnp.where(mc_sub == c, cm, cvals)

    # ---- case A: labels > num_cluster ---------------------------------------
    deltaA = labels - num_cluster
    nA = jnp.floor(deltaA)                         # loop count in the reference
    denomA = jnp.where(deltaA > 0.0, deltaA, 1.0)
    M1sel = jnp.where(unmasked1 < 0.5, v_first, M1)
    mean_num = jnp.where(nA > 0.5, M0 + (nA - 1.0) * M1sel, 0.0)
    lossA = jnp.where(unmasked0 < 0.5, v_first, -mean_num / denomA)
    lossA = jnp.where(deltaA > 0.0, lossA, 0.0)

    # ---- case B: labels < num_cluster -- sum of the floor(delta) smallest ---
    # per-cluster maxima, via an index-tie-broken rank built from one
    # row-broadcast compare per cluster (no shifts / rolls).
    deltaB = num_cluster - labels
    nB = jnp.floor(deltaB)
    denomB = jnp.where(deltaB > 0.0, deltaB, 1.0)
    rank = jnp.zeros((mc_pad, L), dtype=f32)
    for j in range(max_clusters):
        cm_j = cvals[j:j + 1, :]                   # (1, L) static row slice
        cnt = (cm_j < cvals) | ((cm_j == cvals) & (mc_sub > j))
        rank = rank + cnt.astype(f32)
    take = (rank < nB - 0.5) & (cvals < 1e29)
    sumB = jnp.sum(jnp.where(take, cvals, 0.0), axis=0, keepdims=True)
    lossB = jnp.where(deltaB > 0.0, sumB / denomB, 0.0)

    loss_ref[...] = lossA + lossB                  # per-row loss, lane-dense


@jax.jit
def atca_tca_loss(vmem, vlastmem, labels_t, ratio):
    """Matches ATCA_TCA_Loss.forward(vmem, vlastmem, labels_t, ratio)."""
    del vlastmem, ratio          # unused by the reference forward pass
    B, T, N = vmem.shape
    R = B * N

    T_pad = _round_up(T, 16)                 # multiple of 16: bf16/f32 friendly
    max_clusters = (T - 1) // (C + 1) + 1    # max possible clusters per row
    mc_pad = _round_up(max_clusters, 8)

    # ---- lane tile from an explicit VMEM budget (v7x-safe, item 9/10) -------
    R128 = _round_up(R, 128)
    slab = T_pad * 4                         # bytes per lane, one f32 slab
    LIVE_SLABS = 20                          # ~#live (T_pad, L) f32 temporaries
    budget = 16 * 1024 * 1024                # slab budget; v5e/v6e could raise
    L = (budget // (LIVE_SLABS * slab)) // 128 * 128
    L = max(128, min(1024, L))
    L = min(L, R128)
    if R128 >= 256:                          # >=2 grid steps -> v7x core-shard
        L = min(L, max(128, (R128 // 2) // 128 * 128))
    R_pad = _round_up(R, L)
    num_tiles = R_pad // L

    est_vmem = ((LIVE_SLABS + 2) * slab * L          # slabs + dbl-buffered input
                + 2 * 3 * T_pad * T_pad * 2          # bf16 constant matrices x2
                + 8 * mc_pad * L * 4                 # cvals / rank temporaries
                + 8 * L * 4)                         # (1, L) scalars
    vmem_limit = int(min(48 << 20, max(32 << 20, 2 * est_vmem)))

    # ---- time-major, rows-on-lanes layout (minor dim N stays contiguous) ----
    V = jnp.transpose(vmem, (1, 0, 2)).reshape(T, R).astype(jnp.float32)
    V = jnp.pad(V, ((0, T_pad - T), (0, R_pad - R)), constant_values=NEG)
    lab = jnp.pad(labels_t.reshape(1, R).astype(jnp.float32),
                  ((0, 0), (0, R_pad - R)))

    # constant 0/1 matrices (bf16 is exact for 0/1); fetched once per core.
    idx = np.arange(T_pad)
    diff = idx[:, None] - idx[None, :]               # diff[t, u] = t - u
    band_prev = jnp.asarray(((diff >= 1) & (diff <= C)).astype(np.float32),
                            dtype=jnp.bfloat16)
    band_near = jnp.asarray((np.abs(diff) <= C).astype(np.float32),
                            dtype=jnp.bfloat16)
    tril = jnp.asarray((diff >= 0).astype(np.float32), dtype=jnp.bfloat16)

    kernel = functools.partial(_atca_kernel, T=T, c_gap=C,
                               max_clusters=max_clusters, mc_pad=mc_pad)
    mat_spec = pl.BlockSpec((T_pad, T_pad), lambda i: (0, 0))
    row_spec = pl.BlockSpec((1, L), lambda i: (0, i))
    per_lane_loss, spikes = pl.pallas_call(
        kernel,
        grid=(num_tiles,),
        in_specs=[mat_spec, mat_spec, mat_spec,
                  pl.BlockSpec((T_pad, L), lambda i: (0, i)),
                  row_spec],
        out_specs=[row_spec, row_spec],
        out_shape=(
            jax.ShapeDtypeStruct((1, R_pad), jnp.float32),
            jax.ShapeDtypeStruct((1, R_pad), jnp.float32),
        ),
        compiler_params=pltpu.CompilerParams(
            dimension_semantics=("parallel",),
            vmem_limit_bytes=vmem_limit),
    )(band_prev, band_near, tril, V, lab)

    loss = jnp.sum(per_lane_loss[0, :R])             # padded lanes contribute 0
    spike_out = spikes[0, :R].reshape(B, N)
    return loss, spike_out


def _reference(vmem, labels, c_gap):
    """Numpy transcription of the PyTorch loop (deterministic first-spike pick)."""
    B, T, N = vmem.shape
    loss = 0.0
    spike_out = np.zeros((B, N), dtype=np.float32)
    for b in range(B):
        for n in range(N):
            v = vmem[b, :, n]
            pos = np.nonzero(v >= 0)[0]
            beg, end = [0], []
            for i in range(1, len(pos)):
                if pos[i] - pos[i - 1] > c_gap:
                    end.append(i - 1)
                    beg.append(i)
            end.append(len(pos) - 1)
            num_cluster = len(beg)
            if end[-1] < 0:
                num_cluster = 0
            spike_out[b, n] = num_cluster
            lab = float(labels[b, n])
            if lab > num_cluster:
                delta = lab - num_cluster
                mask = np.zeros(T)
                for c in range(num_cluster):
                    cp = pos[beg[c]:end[c] + 1]
                    lmin = max(cp[0] - c_gap, 0)
                    rmax = min(cp[-1] + c_gap, T - 1)
                    mask[lmin:rmax + 1] = 1
                if np.sum(mask == 0) <= 0:
                    loss = loss + v[pos[0]]
                else:
                    meanloss = 0.0
                    for _ in range(int(delta)):
                        if np.sum(mask == 0) <= 0:
                            meanloss += v[pos[0]]
                            continue
                        tm = int(np.argmax(v))
                        lo = int(max(tm - c_gap / 2, 0))
                        hi = int(min(tm + c_gap / 2, T - 1))
                        meanloss += np.max(v[mask == 0])
                        mask[lo:hi + 1] = 1
                    loss = loss - meanloss / delta
            if lab < num_cluster:
                delta = num_cluster - lab
                record = np.zeros(num_cluster)
                for c in range(num_cluster):
                    cp = pos[beg[c]:end[c] + 1]
                    record[c] = np.max(v[cp[0]:cp[-1] + 1])
                record = np.sort(record)
                loss = loss + np.sum(record[:int(delta)]) / delta
    return float(loss), spike_out


if __name__ == "__main__":
    key = jax.random.PRNGKey(0)
    B, T, N = 2, 16, 8
    k1, k2 = jax.random.split(key)
    vmem = 0.8 * jax.random.normal(k1, (B, T, N), dtype=jnp.float32) - 0.2
    vlastmem = jnp.zeros_like(vmem)                     # unused by forward
    labels_t = jax.random.randint(k2, (B, N), 0, 4).astype(jnp.float32)
    ratio = jnp.float32(0.5)                            # unused by forward

    loss, spike_out = atca_tca_loss(vmem, vlastmem, labels_t, ratio)
    jax.block_until_ready((loss, spike_out))

    ref_loss, ref_spike = _reference(np.asarray(vmem), np.asarray(labels_t), C)
    assert np.allclose(np.asarray(spike_out), ref_spike), (spike_out, ref_spike)
    assert abs(float(loss) - ref_loss) < 1e-4, (float(loss), ref_loss)
    print("KERNEL_OK")
</pallas_src>

<mosaic_0001>
module attributes {stable_mosaic.version = 11 : i64} {
  func.func @_atca_kernel(%arg0: i32, %arg1: memref<16x16xbf16, #tpu.memory_space<vmem>>, %arg2: memref<16x16xbf16, #tpu.memory_space<vmem>>, %arg3: memref<16x16xbf16, #tpu.memory_space<vmem>>, %arg4: memref<16x128xf32, #tpu.memory_space<vmem>>, %arg5: memref<1x128xf32, #tpu.memory_space<vmem>>, %arg6: memref<1x128xf32, #tpu.memory_space<vmem>>, %arg7: memref<1x128xf32, #tpu.memory_space<vmem>>) attributes {dimension_semantics = [#tpu.dimension_semantics<parallel>], iteration_bounds = array<i64: 1>, scalar_prefetch = 0 : i64, scratch_operands = 0 : i64, tpu.core_type = #tpu.core_type<tc>, window_params = [{pipeline_mode = #tpu.pipeline_mode<synchronous>, transform_indices = @transform_0, window_bounds = array<i64: 16, 16>}, {pipeline_mode = #tpu.pipeline_mode<synchronous>, transform_indices = @transform_1, window_bounds = array<i64: 16, 16>}, {pipeline_mode = #tpu.pipeline_mode<synchronous>, transform_indices = @transform_2, window_bounds = array<i64: 16, 16>}, {transform_indices = @transform_3, window_bounds = array<i64: 16, 128>}, {transform_indices = @transform_4, window_bounds = array<i64: 1, 128>}, {transform_indices = @transform_5, window_bounds = array<i64: 1, 128>}, {transform_indices = @transform_6, window_bounds = array<i64: 1, 128>}]} {
    %0 = tpu.iota {dimensions = array<i32: 0>} : vector<16x128xi32>
    %1 = arith.sitofp %0 : vector<16x128xi32> to vector<16x128xf32>
    %c16_i32 = arith.constant 16 : i32
    %2 = vector.broadcast %c16_i32 : i32 to vector<16x128xi32>
    %3 = arith.cmpi slt, %0, %2 : vector<16x128xi32>
    %c0 = arith.constant 0 : index
    %c0_0 = arith.constant 0 : index
    %4 = vector.load %arg4[%c0, %c0_0] : memref<16x128xf32, #tpu.memory_space<vmem>>, vector<16x128xf32>
    %cst = arith.constant -1.000000e+30 : f32
    %5 = vector.broadcast %cst : f32 to vector<16x128xf32>
    %6 = arith.select %3, %4, %5 : vector<16x128xi1>, vector<16x128xf32>
    %c0_1 = arith.constant 0 : index
    %c0_2 = arith.constant 0 : index
    %7 = vector.load %arg5[%c0_1, %c0_2] : memref<1x128xf32, #tpu.memory_space<vmem>>, vector<1x128xf32>
    %cst_3 = arith.constant 0.000000e+00 : f32
    %8 = vector.broadcast %cst_3 : f32 to vector<16x128xf32>
    %9 = arith.cmpf oge, %6, %8 : vector<16x128xf32>
    %10 = arith.extui %9 : vector<16x128xi1> to vector<16x128xi32>
    %11 = arith.sitofp %10 : vector<16x128xi32> to vector<16x128xf32>
    %12 = arith.truncf %11 : vector<16x128xf32> to vector<16x128xbf16>
    %c0_4 = arith.constant 0 : index
    %c0_5 = arith.constant 0 : index
    %13 = vector.load %arg1[%c0_4, %c0_5] : memref<16x16xbf16, #tpu.memory_space<vmem>>, vector<16x16xbf16>
    %cst_6 = arith.constant dense<0.000000e+00> : vector<16x128xf32>
    %14 = tpu.matmul %13, %12, %cst_6 {dimension_numbers = #tpu.dot_dimension_numbers<[1], [0], [0], [1], [0, 0, 1, 1], [], []>} : vector<16x16xbf16>, vector<16x128xbf16>, vector<16x128xf32> -> vector<16x128xf32>
    %c0_7 = arith.constant 0 : index
    %c0_8 = arith.constant 0 : index
    %15 = vector.load %arg2[%c0_7, %c0_8] : memref<16x16xbf16, #tpu.memory_space<vmem>>, vector<16x16xbf16>
    %cst_9 = arith.constant dense<0.000000e+00> : vector<16x128xf32>
    %16 = tpu.matmul %15, %12, %cst_9 {dimension_numbers = #tpu.dot_dimension_numbers<[1], [0], [0], [1], [0, 0, 1, 1], [], []>} : vector<16x16xbf16>, vector<16x128xbf16>, vector<16x128xf32> -> vector<16x128xf32>
    %cst_10 = arith.constant 5.000000e-01 : f32
    %17 = vector.broadcast %cst_10 : f32 to vector<16x128xf32>
    %18 = arith.cmpf olt, %14, %17 : vector<16x128xf32>
    %19 = arith.andi %9, %18 : vector<16x128xi1>
    %20 = arith.extui %19 : vector<16x128xi1> to vector<16x128xi32>
    %21 = arith.sitofp %20 : vector<16x128xi32> to vector<16x128xf32>
    %22 = arith.truncf %21 : vector<16x128xf32> to vector<16x128xbf16>
    %c0_11 = arith.constant 0 : index
    %c0_12 = arith.constant 0 : index
    %23 = vector.load %arg3[%c0_11, %c0_12] : memref<16x16xbf16, #tpu.memory_space<vmem>>, vector<16x16xbf16>
    %cst_13 = arith.constant dense<0.000000e+00> : vector<16x128xf32>
    %24 = tpu.matmul %23, %22, %cst_13 {dimension_numbers = #tpu.dot_dimension_numbers<[1], [0], [0], [1], [0, 0, 1, 1], [], []>} : vector<16x16xbf16>, vector<16x128xbf16>, vector<16x128xf32> -> vector<16x128xf32>
    %25 = vector.extract_strided_slice %24 {offsets = [15, 0], sizes = [1, 128], strides = [1, 1]} : vector<16x128xf32> to vector<1x128xf32>
    %c0_14 = arith.constant 0 : index
    %c0_15 = arith.constant 0 : index
    %26 = vector.load %arg7[%c0_14, %c0_15] : memref<1x128xf32, #tpu.memory_space<vmem>>, vector<1x128xf32>
    tpu.vector_store %arg7[%c0_14, %c0_15], %25 {strides = array<i32>} : memref<1x128xf32, #tpu.memory_space<vmem>>, vector<1x128xf32>,
    %cst_16 = arith.constant 5.000000e-01 : f32
    %27 = vector.broadcast %cst_16 : f32 to vector<16x128xf32>
    %28 = arith.cmpf ogt, %16, %27 : vector<16x128xf32>
    %cst_17 = arith.constant dense<true> : vector<16x128xi1>
    %29 = arith.xori %3, %cst_17 : vector<16x128xi1>
    %30 = arith.ori %28, %29 : vector<16x128xi1>
    %cst_18 = arith.constant 0.000000e+00 : f32
    %cst_19 = arith.constant 1.000000e+00 : f32
    %31 = vector.broadcast %cst_18 : f32 to vector<16x128xf32>
    %32 = vector.broadcast %cst_19 : f32 to vector<16x128xf32>
    %33 = arith.select %30, %31, %32 : vector<16x128xi1>, vector<16x128xf32>
    %cst_20 = arith.constant dense<0.000000e+00> : vector<128xf32>
    %34 = vector.multi_reduction <add>, %33, %cst_20 [0] : vector<16x128xf32> to vector<128xf32>
    %35 = vector.shape_cast %34 : vector<128xf32> to vector<1x128xf32>
    %cst_21 = arith.constant 1.600000e+01 : f32
    %36 = vector.broadcast %cst_21 : f32 to vector<16x128xf32>
    %37 = arith.select %9, %1, %36 : vector<16x128xi1>, vector<16x128xf32>
    %cst_22 = arith.constant dense<0x7F800000> : vector<128xf32>
    %38 = vector.multi_reduction <minimumf>, %37, %cst_22 [0] : vector<16x128xf32> to vector<128xf32>
    %39 = vector.shape_cast %38 : vector<128xf32> to vector<1x128xf32>
    %40 = vector.broadcast %39 : vector<1x128xf32> to vector<16x128xf32>
    %41 = arith.cmpf oeq, %1, %40 : vector<16x128xf32>
    %cst_23 = arith.constant 0.000000e+00 : f32
    %42 = vector.broadcast %cst_23 : f32 to vector<16x128xf32>
    %43 = arith.select %41, %6, %42 : vector<16x128xi1>, vector<16x128xf32>
    %cst_24 = arith.constant dense<0.000000e+00> : vector<128xf32>
    %44 = vector.multi_reduction <add>, %43, %cst_24 [0] : vector<16x128xf32> to vector<128xf32>
    %45 = vector.shape_cast %44 : vector<128xf32> to vector<1x128xf32>
    %cst_25 = arith.constant -1.000000e+30 : f32
    %46 = vector.broadcast %cst_25 : f32 to vector<16x128xf32>
    %47 = arith.select %30, %46, %6 : vector<16x128xi1>, vector<16x128xf32>
    %cst_26 = arith.constant dense<0xFF800000> : vector<128xf32>
    %48 = vector.multi_reduction <maximumf>, %47, %cst_26 [0] : vector<16x128xf32> to vector<128xf32>
    %49 = vector.shape_cast %48 : vector<128xf32> to vector<1x128xf32>
    %cst_27 = arith.constant dense<0xFF800000> : vector<128xf32>
    %50 = vector.multi_reduction <maximumf>, %6, %cst_27 [0] : vector<16x128xf32> to vector<128xf32>
    %51 = vector.shape_cast %50 : vector<128xf32> to vector<1x128xf32>
    %52 = vector.broadcast %51 : vector<1x128xf32> to vector<16x128xf32>
    %53 = arith.cmpf oeq, %6, %52 : vector<16x128xf32>
    %cst_28 = arith.constant 1.600000e+01 : f32
    %54 = vector.broadcast %cst_28 : f32 to vector<16x128xf32>
    %55 = arith.select %53, %1, %54 : vector<16x128xi1>, vector<16x128xf32>
    %cst_29 = arith.constant dense<0x7F800000> : vector<128xf32>
    %56 = vector.multi_reduction <minimumf>, %55, %cst_29 [0] : vector<16x128xf32> to vector<128xf32>
    %57 = vector.shape_cast %56 : vector<128xf32> to vector<1x128xf32>
    %cst_30 = arith.constant 2.000000e+00 : f32
    %58 = vector.broadcast %cst_30 : f32 to vector<1x128xf32>
    %59 = arith.subf %57, %58 : vector<1x128xf32>
    %cst_31 = arith.constant 0.000000e+00 : f32
    %60 = vector.broadcast %cst_31 : f32 to vector<1x128xf32>
    %61 = arith.maximumf %59, %60 : vector<1x128xf32>
    %cst_32 = arith.constant 2.000000e+00 : f32
    %62 = vector.broadcast %cst_32 : f32 to vector<1x128xf32>
    %63 = arith.addf %57, %62 : vector<1x128xf32>
    %cst_33 = arith.constant 1.500000e+01 : f32
    %64 = vector.broadcast %cst_33 : f32 to vector<1x128xf32>
    %65 = arith.minimumf %63, %64 : vector<1x128xf32>
    %66 = vector.broadcast %61 : vector<1x128xf32> to vector<16x128xf32>
    %67 = arith.cmpf oge, %1, %66 : vector<16x128xf32>
    %68 = vector.broadcast %65 : vector<1x128xf32> to vector<16x128xf32>
    %69 = arith.cmpf ole, %1, %68 : vector<16x128xf32>
    %70 = arith.andi %67, %69 : vector<16x128xi1>
    %71 = arith.ori %30, %70 : vector<16x128xi1>
    %cst_34 = arith.constant 0.000000e+00 : f32
    %cst_35 = arith.constant 1.000000e+00 : f32
    %72 = vector.broadcast %cst_34 : f32 to vector<16x128xf32>
    %73 = vector.broadcast %cst_35 : f32 to vector<16x128xf32>
    %74 = arith.select %71, %72, %73 : vector<16x128xi1>, vector<16x128xf32>
    %cst_36 = arith.constant dense<0.000000e+00> : vector<128xf32>
    %75 = vector.multi_reduction <add>, %74, %cst_36 [0] : vector<16x128xf32> to vector<128xf32>
    %76 = vector.shape_cast %75 : vector<128xf32> to vector<1x128xf32>
    %cst_37 = arith.constant -1.000000e+30 : f32
    %77 = vector.broadcast %cst_37 : f32 to vector<16x128xf32>
    %78 = arith.select %71, %77, %6 : vector<16x128xi1>, vector<16x128xf32>
    %cst_38 = arith.constant dense<0xFF800000> : vector<128xf32>
    %79 = vector.multi_reduction <maximumf>, %78, %cst_38 [0] : vector<16x128xf32> to vector<128xf32>
    %80 = vector.shape_cast %79 : vector<128xf32> to vector<1x128xf32>
    %cst_39 = arith.constant 0.000000e+00 : f32
    %81 = vector.broadcast %cst_39 : f32 to vector<16x128xf32>
    %82 = arith.select %9, %24, %81 : vector<16x128xi1>, vector<16x128xf32>
    %83 = tpu.iota {dimensions = array<i32: 0>} : vector<8x128xi32>
    %cst_40 = arith.constant 1.000000e+30 : f32
    %84 = vector.broadcast %cst_40 : f32 to vector<8x128xf32>
    %cst_41 = arith.constant 1.000000e+00 : f32
    %85 = vector.broadcast %cst_41 : f32 to vector<16x128xf32>
    %86 = arith.cmpf oeq, %82, %85 : vector<16x128xf32>
    %cst_42 = arith.constant -1.000000e+30 : f32
    %87 = vector.broadcast %cst_42 : f32 to vector<16x128xf32>
    %88 = arith.select %86, %6, %87 : vector<16x128xi1>, vector<16x128xf32>
    %cst_43 = arith.constant dense<0xFF800000> : vector<128xf32>
    %89 = vector.multi_reduction <maximumf>, %88, %cst_43 [0] : vector<16x128xf32> to vector<128xf32>
    %90 = vector.shape_cast %89 : vector<128xf32> to vector<1x128xf32>
    %cst_44 = arith.constant -1.000000e+29 : f32
    %91 = vector.broadcast %cst_44 : f32 to vector<1x128xf32>
    %92 = arith.cmpf olt, %90, %91 : vector<1x128xf32>
    %cst_45 = arith.constant 1.000000e+30 : f32
    %93 = vector.broadcast %cst_45 : f32 to vector<1x128xf32>
    %94 = arith.select %92, %93, %90 : vector<1x128xi1>, vector<1x128xf32>
    %c0_i32 = arith.constant 0 : i32
    %95 = vector.broadcast %c0_i32 : i32 to vector<8x128xi32>
    %96 = arith.cmpi eq, %83, %95 : vector<8x128xi32>
    %97 = vector.shape_cast %94 : vector<1x128xf32> to vector<1x128xf32>
    %98 = vector.broadcast %97 : vector<1x128xf32> to vector<8x128xf32>
    %99 = arith.select %96, %98, %84 : vector<8x128xi1>, vector<8x128xf32>
    %cst_46 = arith.constant 2.000000e+00 : f32
    %100 = vector.broadcast %cst_46 : f32 to vector<16x128xf32>
    %101 = arith.cmpf oeq, %82, %100 : vector<16x128xf32>
    %cst_47 = arith.constant -1.000000e+30 : f32
    %102 = vector.broadcast %cst_47 : f32 to vector<16x128xf32>
    %103 = arith.select %101, %6, %102 : vector<16x128xi1>, vector<16x128xf32>
    %cst_48 = arith.constant dense<0xFF800000> : vector<128xf32>
    %104 = vector.multi_reduction <maximumf>, %103, %cst_48 [0] : vector<16x128xf32> to vector<128xf32>
    %105 = vector.shape_cast %104 : vector<128xf32> to vector<1x128xf32>
    %cst_49 = arith.constant -1.000000e+29 : f32
    %106 = vector.broadcast %cst_49 : f32 to vector<1x128xf32>
    %107 = arith.cmpf olt, %105, %106 : vector<1x128xf32>
    %cst_50 = arith.constant 1.000000e+30 : f32
    %108 = vector.broadcast %cst_50 : f32 to vector<1x128xf32>
    %109 = arith.select %107, %108, %105 : vector<1x128xi1>, vector<1x128xf32>
    %c1_i32 = arith.constant 1 : i32
    %110 = vector.broadcast %c1_i32 : i32 to vector<8x128xi32>
    %111 = arith.cmpi eq, %83, %110 : vector<8x128xi32>
    %112 = vector.shape_cast %109 : vector<1x128xf32> to vector<1x128xf32>
    %113 = vector.broadcast %112 : vector<1x128xf32> to vector<8x128xf32>
    %114 = arith.select %111, %113, %99 : vector<8x128xi1>, vector<8x128xf32>
    %cst_51 = arith.constant 3.000000e+00 : f32
    %115 = vector.broadcast %cst_51 : f32 to vector<16x128xf32>
    %116 = arith.cmpf oeq, %82, %115 : vector<16x128xf32>
    %cst_52 = arith.constant -1.000000e+30 : f32
    %117 = vector.broadcast %cst_52 : f32 to vector<16x128xf32>
    %118 = arith.select %116, %6, %117 : vector<16x128xi1>, vector<16x128xf32>
    %cst_53 = arith.constant dense<0xFF800000> : vector<128xf32>
    %119 = vector.multi_reduction <maximumf>, %118, %cst_53 [0] : vector<16x128xf32> to vector<128xf32>
    %120 = vector.shape_cast %119 : vector<128xf32> to vector<1x128xf32>
    %cst_54 = arith.constant -1.000000e+29 : f32
    %121 = vector.broadcast %cst_54 : f32 to vector<1x128xf32>
    %122 = arith.cmpf olt, %120, %121 : vector<1x128xf32>
    %cst_55 = arith.constant 1.000000e+30 : f32
    %123 = vector.broadcast %cst_55 : f32 to vector<1x128xf32>
    %124 = arith.select %122, %123, %120 : vector<1x128xi1>, vector<1x128xf32>
    %c2_i32 = arith.constant 2 : i32
    %125 = vector.broadcast %c2_i32 : i32 to vector<8x128xi32>
    %126 = arith.cmpi eq, %83, %125 : vector<8x128xi32>
    %127 = vector.shape_cast %124 : vector<1x128xf32> to vector<1x128xf32>
    %128 = vector.broadcast %127 : vector<1x128xf32> to vector<8x128xf32>
    %129 = arith.select %126, %128, %114 : vector<8x128xi1>, vector<8x128xf32>
    %cst_56 = arith.constant 4.000000e+00 : f32
    %130 = vector.broadcast %cst_56 : f32 to vector<16x128xf32>
    %131 = arith.cmpf oeq, %82, %130 : vector<16x128xf32>
    %cst_57 = arith.constant -1.000000e+30 : f32
    %132 = vector.broadcast %cst_57 : f32 to vector<16x128xf32>
    %133 = arith.select %131, %6, %132 : vector<16x128xi1>, vector<16x128xf32>
    %cst_58 = arith.constant dense<0xFF800000> : vector<128xf32>
    %134 = vector.multi_reduction <maximumf>, %133, %cst_58 [0] : vector<16x128xf32> to vector<128xf32>
    %135 = vector.shape_cast %134 : vector<128xf32> to vector<1x128xf32>
    %cst_59 = arith.constant -1.000000e+29 : f32
    %136 = vector.broadcast %cst_59 : f32 to vector<1x128xf32>
    %137 = arith.cmpf olt, %135, %136 : vector<1x128xf32>
    %cst_60 = arith.constant 1.000000e+30 : f32
    %138 = vector.broadcast %cst_60 : f32 to vector<1x128xf32>
    %139 = arith.select %137, %138, %135 : vector<1x128xi1>, vector<1x128xf32>
    %c3_i32 = arith.constant 3 : i32
    %140 = vector.broadcast %c3_i32 : i32 to vector<8x128xi32>
    %141 = arith.cmpi eq, %83, %140 : vector<8x128xi32>
    %142 = vector.shape_cast %139 : vector<1x128xf32> to vector<1x128xf32>
    %143 = vector.broadcast %142 : vector<1x128xf32> to vector<8x128xf32>
    %144 = arith.select %141, %143, %129 : vector<8x128xi1>, vector<8x128xf32>
    %145 = arith.subf %7, %25 : vector<1x128xf32>
    %146 = math.floor %145 : vector<1x128xf32>
    %cst_61 = arith.constant 0.000000e+00 : f32
    %147 = vector.broadcast %cst_61 : f32 to vector<1x128xf32>
    %148 = arith.cmpf ogt, %145, %147 : vector<1x128xf32>
    %cst_62 = arith.constant 1.000000e+00 : f32
    %149 = vector.broadcast %cst_62 : f32 to vector<1x128xf32>
    %150 = arith.select %148, %145, %149 : vector<1x128xi1>, vector<1x128xf32>
    %cst_63 = arith.constant 5.000000e-01 : f32
    %151 = vector.broadcast %cst_63 : f32 to vector<1x128xf32>
    %152 = arith.cmpf olt, %76, %151 : vector<1x128xf32>
    %153 = arith.select %152, %45, %80 : vector<1x128xi1>, vector<1x128xf32>
    %cst_64 = arith.constant 5.000000e-01 : f32
    %154 = vector.broadcast %cst_64 : f32 to vector<1x128xf32>
    %155 = arith.cmpf ogt, %146, %154 : vector<1x128xf32>
    %cst_65 = arith.constant 1.000000e+00 : f32
    %156 = vector.broadcast %cst_65 : f32 to vector<1x128xf32>
    %157 = arith.subf %146, %156 : vector<1x128xf32>
    %158 = arith.mulf %157, %153 : vector<1x128xf32>
    %159 = arith.addf %49, %158 : vector<1x128xf32>
    %cst_66 = arith.constant 0.000000e+00 : f32
    %160 = vector.broadcast %cst_66 : f32 to vector<1x128xf32>
    %161 = arith.select %155, %159, %160 : vector<1x128xi1>, vector<1x128xf32>
    %cst_67 = arith.constant 5.000000e-01 : f32
    %162 = vector.broadcast %cst_67 : f32 to vector<1x128xf32>
    %163 = arith.cmpf olt, %35, %162 : vector<1x128xf32>
    %cst_68 = arith.constant 0.000000e+00 : f32
    %164 = vector.broadcast %cst_68 : f32 to vector<1x128xf32>
    %165 = arith.subf %164, %161 : vector<1x128xf32>
    %166 = arith.divf %165, %150 : vector<1x128xf32>
    %167 = arith.select %163, %45, %166 : vector<1x128xi1>, vector<1x128xf32>
    %cst_69 = arith.constant 0.000000e+00 : f32
    %168 = vector.broadcast %cst_69 : f32 to vector<1x128xf32>
    %169 = arith.cmpf ogt, %145, %168 : vector<1x128xf32>
    %cst_70 = arith.constant 0.000000e+00 : f32
    %170 = vector.broadcast %cst_70 : f32 to vector<1x128xf32>
    %171 = arith.select %169, %167, %170 : vector<1x128xi1>, vector<1x128xf32>
    %172 = arith.subf %25, %7 : vector<1x128xf32>
    %173 = math.floor %172 : vector<1x128xf32>
    %cst_71 = arith.constant 0.000000e+00 : f32
    %174 = vector.broadcast %cst_71 : f32 to vector<1x128xf32>
    %175 = arith.cmpf ogt, %172, %174 : vector<1x128xf32>
    %cst_72 = arith.constant 1.000000e+00 : f32
    %176 = vector.broadcast %cst_72 : f32 to vector<1x128xf32>
    %177 = arith.select %175, %172, %176 : vector<1x128xi1>, vector<1x128xf32>
    %cst_73 = arith.constant 0.000000e+00 : f32
    %178 = vector.broadcast %cst_73 : f32 to vector<8x128xf32>
    %179 = vector.extract_strided_slice %144 {offsets = [0, 0], sizes = [1, 128], strides = [1, 1]} : vector<8x128xf32> to vector<1x128xf32>
    %180 = vector.broadcast %179 : vector<1x128xf32> to vector<8x128xf32>
    %181 = arith.cmpf olt, %180, %144 : vector<8x128xf32>
    %182 = vector.broadcast %179 : vector<1x128xf32> to vector<8x128xf32>
    %183 = arith.cmpf oeq, %182, %144 : vector<8x128xf32>
    %c0_i32_74 = arith.constant 0 : i32
    %184 = vector.broadcast %c0_i32_74 : i32 to vector<8x128xi32>
    %185 = arith.cmpi sgt, %83, %184 : vector<8x128xi32>
    %186 = arith.andi %183, %185 : vector<8x128xi1>
    %187 = arith.ori %181, %186 : vector<8x128xi1>
    %188 = arith.extui %187 : vector<8x128xi1> to vector<8x128xi32>
    %189 = arith.sitofp %188 : vector<8x128xi32> to vector<8x128xf32>
    %190 = arith.addf %178, %189 : vector<8x128xf32>
    %191 = vector.extract_strided_slice %144 {offsets = [1, 0], sizes = [1, 128], strides = [1, 1]} : vector<8x128xf32> to vector<1x128xf32>
    %192 = vector.broadcast %191 : vector<1x128xf32> to vector<8x128xf32>
    %193 = arith.cmpf olt, %192, %144 : vector<8x128xf32>
    %194 = vector.broadcast %191 : vector<1x128xf32> to vector<8x128xf32>
    %195 = arith.cmpf oeq, %194, %144 : vector<8x128xf32>
    %c1_i32_75 = arith.constant 1 : i32
    %196 = vector.broadcast %c1_i32_75 : i32 to vector<8x128xi32>
    %197 = arith.cmpi sgt, %83, %196 : vector<8x128xi32>
    %198 = arith.andi %195, %197 : vector<8x128xi1>
    %199 = arith.ori %193, %198 : vector<8x128xi1>
    %200 = arith.extui %199 : vector<8x128xi1> to vector<8x128xi32>
    %201 = arith.sitofp %200 : vector<8x128xi32> to vector<8x128xf32>
    %202 = arith.addf %190, %201 : vector<8x128xf32>
    %203 = vector.extract_strided_slice %144 {offsets = [2, 0], sizes = [1, 128], strides = [1, 1]} : vector<8x128xf32> to vector<1x128xf32>
    %204 = vector.broadcast %203 : vector<1x128xf32> to vector<8x128xf32>
    %205 = arith.cmpf olt, %204, %144 : vector<8x128xf32>
    %206 = vector.broadcast %203 : vector<1x128xf32> to vector<8x128xf32>
    %207 = arith.cmpf oeq, %206, %144 : vector<8x128xf32>
    %c2_i32_76 = arith.constant 2 : i32
    %208 = vector.broadcast %c2_i32_76 : i32 to vector<8x128xi32>
    %209 = arith.cmpi sgt, %83, %208 : vector<8x128xi32>
    %210 = arith.andi %207, %209 : vector<8x128xi1>
    %211 = arith.ori %205, %210 : vector<8x128xi1>
    %212 = arith.extui %211 : vector<8x128xi1> to vector<8x128xi32>
    %213 = arith.sitofp %212 : vector<8x128xi32> to vector<8x128xf32>
    %214 = arith.addf %202, %213 : vector<8x128xf32>
    %215 = vector.extract_strided_slice %144 {offsets = [3, 0], sizes = [1, 128], strides = [1, 1]} : vector<8x128xf32> to vector<1x128xf32>
    %216 = vector.broadcast %215 : vector<1x128xf32> to vector<8x128xf32>
    %217 = arith.cmpf olt, %216, %144 : vector<8x128xf32>
    %218 = vector.broadcast %215 : vector<1x128xf32> to vector<8x128xf32>
    %219 = arith.cmpf oeq, %218, %144 : vector<8x128xf32>
    %c3_i32_77 = arith.constant 3 : i32
    %220 = vector.broadcast %c3_i32_77 : i32 to vector<8x128xi32>
    %221 = arith.cmpi sgt, %83, %220 : vector<8x128xi32>
    %222 = arith.andi %219, %221 : vector<8x128xi1>
    %223 = arith.ori %217, %222 : vector<8x128xi1>
    %224 = arith.extui %223 : vector<8x128xi1> to vector<8x128xi32>
    %225 = arith.sitofp %224 : vector<8x128xi32> to vector<8x128xf32>
    %226 = arith.addf %214, %225 : vector<8x128xf32>
    %cst_78 = arith.constant 5.000000e-01 : f32
    %227 = vector.broadcast %cst_78 : f32 to vector<1x128xf32>
    %228 = arith.subf %173, %227 : vector<1x128xf32>
    %229 = vector.broadcast %228 : vector<1x128xf32> to vector<8x128xf32>
    %230 = arith.cmpf olt, %226, %229 : vector<8x128xf32>
    %cst_79 = arith.constant 1.000000e+29 : f32
    %231 = vector.broadcast %cst_79 : f32 to vector<8x128xf32>
    %232 = arith.cmpf olt, %144, %231 : vector<8x128xf32>
    %233 = arith.andi %230, %232 : vector<8x128xi1>
    %cst_80 = arith.constant 0.000000e+00 : f32
    %234 = vector.broadcast %cst_80 : f32 to vector<8x128xf32>
    %235 = arith.select %233, %144, %234 : vector<8x128xi1>, vector<8x128xf32>
    %cst_81 = arith.constant dense<0.000000e+00> : vector<128xf32>
    %236 = vector.multi_reduction <add>, %235, %cst_81 [0] : vector<8x128xf32> to vector<128xf32>
    %237 = vector.shape_cast %236 : vector<128xf32> to vector<1x128xf32>
    %cst_82 = arith.constant 0.000000e+00 : f32
    %238 = vector.broadcast %cst_82 : f32 to vector<1x128xf32>
    %239 = arith.cmpf ogt, %172, %238 : vector<1x128xf32>
    %240 = arith.divf %237, %177 : vector<1x128xf32>
    %cst_83 = arith.constant 0.000000e+00 : f32
    %241 = vector.broadcast %cst_83 : f32 to vector<1x128xf32>
    %242 = arith.select %239, %240, %241 : vector<1x128xi1>, vector<1x128xf32>
    %243 = arith.addf %171, %242 : vector<1x128xf32>
    %c0_84 = arith.constant 0 : index
    %c0_85 = arith.constant 0 : index
    %244 = vector.load %arg6[%c0_84, %c0_85] : memref<1x128xf32, #tpu.memory_space<vmem>>, vector<1x128xf32>
    tpu.vector_store %arg6[%c0_84, %c0_85], %243 {strides = array<i32>} : memref<1x128xf32, #tpu.memory_space<vmem>>, vector<1x128xf32>,
    return
  }
  func.func @transform_0(%arg0: i32) -> (i32, i32) {
    %c0_i32 = arith.constant 0 : i32
    %c0_i32_0 = arith.constant 0 : i32
    %c0_i32_1 = arith.constant 0 : i32
    return %c0_i32, %c0_i32_0 : i32, i32
  }
  func.func @transform_1(%arg0: i32) -> (i32, i32) {
    %c0_i32 = arith.constant 0 : i32
    %c0_i32_0 = arith.constant 0 : i32
    %c0_i32_1 = arith.constant 0 : i32
    return %c0_i32, %c0_i32_0 : i32, i32
  }
  func.func @transform_2(%arg0: i32) -> (i32, i32) {
    %c0_i32 = arith.constant 0 : i32
    %c0_i32_0 = arith.constant 0 : i32
    %c0_i32_1 = arith.constant 0 : i32
    return %c0_i32, %c0_i32_0 : i32, i32
  }
  func.func @transform_3(%arg0: i32) -> (i32, i32) {
    %c0_i32 = arith.constant 0 : i32
    %c0_i32_0 = arith.constant 0 : i32
    return %c0_i32, %arg0 : i32, i32
  }
  func.func @transform_4(%arg0: i32) -> (i32, i32) {
    %c0_i32 = arith.constant 0 : i32
    %c0_i32_0 = arith.constant 0 : i32
    return %c0_i32, %arg0 : i32, i32
  }
  func.func @transform_5(%arg0: i32) -> (i32, i32) {
    %c0_i32 = arith.constant 0 : i32
    %c0_i32_0 = arith.constant 0 : i32
    return %c0_i32, %arg0 : i32, i32
  }
  func.func @transform_6(%arg0: i32) -> (i32, i32) {
    %c0_i32 = arith.constant 0 : i32
    %c0_i32_0 = arith.constant 0 : i32
    return %c0_i32, %arg0 : i32, i32
  }
}

</mosaic_0001>

<llo_original>
// kernel: squeeze.3
$region0: #{squeeze.3}
  %s0 = inlined_call_operand.vmem [shape: f32[16], index: 0, kind: input, shape index: {}]
  %s1 = inlined_call_operand.hbm [shape: f32[2,8], index: 1, kind: output, shape index: {}]
  $region1: #{squeeze.3} parent=0
    #allocation0 [shape = 'u8[1024]{0}', space=vmem, size = 0x400, scoped, tag = 'operand span for operand 1']
    #allocation1 [shape = 's32[1]{0}', space=sflag, size = 0x4, scoped, tag = 'scoped memory for squeeze.3']
    #allocation2 [shape = 'u8[4096]{0}', space=vmem, size = 0x1000, scoped, tag = 'scoped mem for output reshape']
    #allocation3 [shape = 'u8[4096]{0}', space=vmem, size = 0x1000, scoped, tag = 'scoped mem for input reshape']
    %2 = vsyncpa [#allocation1], 0
    %s4 = sshll.u32 1, 1
    %s5 = ssub.s32 %s4, 1
    %v6 = vld [vmem:[%s0] sm:%s5]
    %7 = vst [vmem:[#allocation3] sm:%s5] %v6
    %v8 = vld [vmem:[#allocation3] sm:$0x1]
    %vm9 = vcmask 64512
    %10 = vst.msk [vmem:[#allocation2] sm:$0x1] %vm9, %v8
    %v11 = vld [vmem:[#allocation3] sm:$0x1]
    %12 = vrot.lane.b32.xlu0 %v11, 120
    %v13 = vpop.permute.xlu0 %12
    %vm14 = vcmask 64512
    %s15 = scalar_lea.vmem [#allocation2], 1
    %16 = vst.msk [vmem:[%s15] sm:$0x1] %vm14, %v13
    %s18 = sshll.u32 1, 2
    %s19 = ssub.s32 %s18, 1
    %v21 = vld [vmem:[#allocation2] sm:%s19]
    %s22 = sshll.u32 1, 2
    %s23 = ssub.s32 %s22, 1
    %24 = vst [vmem:[#allocation0] sm:%s23] %v21
    %s26 = ssub.s32 32, 32
    %27 = vsyncadd [#allocation1], %s26
    %s29 = sshll.u32 [#allocation0], 4
    %s30 = int_to_ptr.vmem [resolvable:$true] %s29
    %32 = dma.vmem_to_hbm [thread:$0]  %s30, 32, %s1, [#allocation1]
    %33 = dma.done [#allocation1], 32
    %34 = vsyncpa [#allocation1], 1

// kernel: atca_tca_loss.1
$region0: #{atca_tca_loss.1}
  #allocation0 [shape = 'u32[]', space=smem, size = 0x4, offset = 0x4, fixed_abs, tag = 'smem constant byte address 0x4 - core index']
  #allocation1 [shape = 'u32[144,128]{1,0:T(1,128)}', space=vmem, size = 0x12000, scoped, tag = 'internal scratch']
  %s0 = inlined_call_operand.vmem [shape: bf16[16,16], index: 0, kind: input, shape index: {}]
  %s1 = inlined_call_operand.vmem [shape: bf16[16,16], index: 1, kind: input, shape index: {}]
  %s2 = inlined_call_operand.vmem [shape: bf16[16,16], index: 2, kind: input, shape index: {}]
  %s3 = inlined_call_operand.vmem [shape: f32[16,128], index: 3, kind: input, shape index: {}]
  %s4 = inlined_call_operand.vmem [shape: f32[1,128], index: 4, kind: input, shape index: {}]
  %s5 = inlined_call_operand.vmem [shape: f32[1,128], index: 5, kind: output, shape index: {0}]
  %s6 = inlined_call_operand.vmem [shape: f32[1,128], index: 6, kind: output, shape index: {1}]
  %7 = xla_tuple %s5, %s6
  %s8 = sld [smem:[#allocation0]]
  $region38: #{atca_tca_loss.1} parent=0
    _
  %s10 = ssub.s32 1, %s8
  %s11 = scalar_select 0, %s10, %s8
  // Predicated region
  $region2: #{atca_tca_loss.1} parent=0 // pred_check
    _
  $region3: #{atca_tca_loss.1} parent=0 // pred_check_branch
    %13 = sbr.rel (0) target = $region5
  $region4: #{atca_tca_loss.1} parent=0 // pred_region
    _
  $region5: #{atca_tca_loss.1} parent=0 // pred_fallthru
    _
  // Predicated region
  $region6: #{atca_tca_loss.1} parent=0 // pred_check
    _
  $region7: #{atca_tca_loss.1} parent=0 // pred_check_branch
    %15 = sbr.rel (0) target = $region9
  $region8: #{atca_tca_loss.1} parent=0 // pred_region
    _
  $region9: #{atca_tca_loss.1} parent=0 // pred_fallthru
    _
  // Predicated region
  $region10: #{atca_tca_loss.1} parent=0 // pred_check
    _
  $region11: #{atca_tca_loss.1} parent=0 // pred_check_branch
    %17 = sbr.rel (0) target = $region13
  $region12: #{atca_tca_loss.1} parent=0 // pred_region
    _
  $region13: #{atca_tca_loss.1} parent=0 // pred_fallthru
    _
  // Predicated region
  $region14: #{atca_tca_loss.1} parent=0 // pred_check
    _
  $region15: #{atca_tca_loss.1} parent=0 // pred_check_branch
    %19 = sbr.rel (0) target = $region17
  $region16: #{atca_tca_loss.1} parent=0 // pred_region
    _
  $region17: #{atca_tca_loss.1} parent=0 // pred_fallthru
    _
  // Predicated region
  $region18: #{atca_tca_loss.1} parent=0 // pred_check
    _
  $region19: #{atca_tca_loss.1} parent=0 // pred_check_branch
    %21 = sbr.rel (0) target = $region21
  $region20: #{atca_tca_loss.1} parent=0 // pred_region
    _
  $region21: #{atca_tca_loss.1} parent=0 // pred_fallthru
    _
  %v23 = vlaneseq
  %v24 = vshrl.u32 %v23, 7
  %v25 = vadd.s32 %v24, 8
  %v26 = vcvt.s32.f32 %v24
  %v27 = vcvt.s32.f32 %v25
  %vm28 = vcmp.lt.s32.totalorder %v24, 16
  %vm29 = vcmp.lt.s32.totalorder %v25, 16
  %v30 = vld [vmem:[%s3] sm:$0xff]
  %v31 = vld [vmem:[%s3 + $0x8] sm:$0xff]
  %v32 = vsel %vm28, %v30, -1e+30
  %v33 = vsel %vm29, %v31, -1e+30
  %v34 = vld [vmem:[%s4] sm:$0x1]
  %vm35 = vcmp.ge.f32.partialorder %v32, 0.0
  %vm36 = vcmp.ge.f32.partialorder %v33, 0.0
  %v37 = vsel %vm35, 1, 0
  %v38 = vsel %vm36, 1, 0
  %v39 = vcvt.s32.f32 %v37
  %v40 = vcvt.s32.f32 %v38
  %v41 = vpack.c.bf16 %v40, %v39
  %v42 = vld [vmem:[%s0] sm:$0xf]
  %v43 = vld [vmem:[%s0 + $0x4] sm:$0xf]
  %v46 = vunpack.c.l.b16 %v42
  %v47 = vunpack.c.l.b16 %v43
  %v48 = vpack.c.b16 %v47, %v46
  %vm49 = vcmask 130048
  %v51 = vsel %vm49, %v48, 0
  %53 = vmatprep.subr.bf16.mxu0 0
  %54 = vmatpush1.bf16.msra.mxu0 0
  %55 = vmatprep.subr.bf16.mxu0 0
  %56 = vmatpush1.bf16.msra.mxu0 0
  %57 = vmatprep.subr.bf16.mxu0 0
  %58 = vmatpush1.bf16.msra.mxu0 0
  %59 = vmatprep.subr.bf16.mxu0 0
  %60 = vmatpush1.bf16.msra.mxu0 0
  %61 = vmatprep.subr.bf16.mxu0 0
  %62 = vmatpush1.bf16.msra.mxu0 0
  %63 = vmatprep.subr.bf16.mxu0 0
  %64 = vmatpush1.bf16.msra.mxu0 0
  %65 = vmatprep.subr.bf16.mxu0 0
  %66 = vmatpush1.bf16.msra.mxu0 0
  %67 = vmatprep.subr.bf16.mxu0 0
  %68 = vmatpush1.bf16.msra.mxu0 %v41
  %69 = vmatprep.subr.bf16.mxu0 0
  %70 = vmatpush2.bf16.msra.mxu0 0
  %71 = vmatprep.subr.bf16.mxu0 0
  %72 = vmatpush2.bf16.msra.mxu0 0
  %73 = vmatprep.subr.bf16.mxu0 0
  %74 = vmatpush2.bf16.msra.mxu0 0
  %75 = vmatprep.subr.bf16.mxu0 0
  %76 = vmatpush2.bf16.msra.mxu0 0
  %77 = vmatprep.subr.bf16.mxu0 0
  %78 = vmatpush2.bf16.msra.mxu0 0
  %79 = vmatprep.subr.bf16.mxu0 0
  %80 = vmatpush2.bf16.msra.mxu0 0
  %81 = vmatprep.subr.bf16.mxu0 0
  %82 = vmatpush2.bf16.msra.mxu0 0
  %83 = vmatprep.subr.bf16.mxu0 0
  %84 = vmatpush2.bf16.msra.mxu0 0
  %85 = vmatprep.mubr.bf16.mxu0 0
  %86 = vmatmul.mubr.bf16.gmra.mxu0 %v51
  %v87 = vpop.f32.mrf.mxu0
  %v88 = vadd.f32 0.0, %v87
  %v89 = vpop.f32.mrf.mxu0
  %v90 = vpop.f32.mrf.mxu0
  %v91 = vadd.f32 0.0, %v90
  %v92 = vpop.f32.mrf.mxu0
  %93 = vdwg.mxu0
  %v94 = vld [vmem:[%s1] sm:$0xf]
  %v95 = vld [vmem:[%s1 + $0x4] sm:$0xf]
  %v98 = vunpack.c.l.b16 %v94
  %v99 = vunpack.c.l.b16 %v95
  %v100 = vpack.c.b16 %v99, %v98
  %v102 = vsel %vm49, %v100, 0
  %104 = vmatprep.subr.bf16.mxu0 0
  %105 = vmatpush1.bf16.msra.mxu0 0
  %106 = vmatprep.subr.bf16.mxu0 0
  %107 = vmatpush1.bf16.msra.mxu0 0
  %108 = vmatprep.subr.bf16.mxu0 0
  %109 = vmatpush1.bf16.msra.mxu0 0
  %110 = vmatprep.subr.bf16.mxu0 0
  %111 = vmatpush1.bf16.msra.mxu0 0
  %112 = vmatprep.subr.bf16.mxu0 0
  %113 = vmatpush1.bf16.msra.mxu0 0
  %114 = vmatprep.subr.bf16.mxu0 0
  %115 = vmatpush1.bf16.msra.mxu0 0
  %116 = vmatprep.subr.bf16.mxu0 0
  %117 = vmatpush1.bf16.msra.mxu0 0
  %118 = vmatprep.subr.bf16.mxu0 0
  %119 = vmatpush1.bf16.msra.mxu0 %v41
  %120 = vmatprep.subr.bf16.mxu0 0
  %121 = vmatpush2.bf16.msra.mxu0 0
  %122 = vmatprep.subr.bf16.mxu0 0
  %123 = vmatpush2.bf16.msra.mxu0 0
  %124 = vmatprep.subr.bf16.mxu0 0
  %125 = vmatpush2.bf16.msra.mxu0 0
  %126 = vmatprep.subr.bf16.mxu0 0
  %127 = vmatpush2.bf16.msra.mxu0 0
  %128 = vmatprep.subr.bf16.mxu0 0
  %129 = vmatpush2.bf16.msra.mxu0 0
  %130 = vmatprep.subr.bf16.mxu0 0
  %131 = vmatpush2.bf16.msra.mxu0 0
  %132 = vmatprep.subr.bf16.mxu0 0
  %133 = vmatpush2.bf16.msra.mxu0 0
  %134 = vmatprep.subr.bf16.mxu0 0
  %135 = vmatpush2.bf16.msra.mxu0 0
  %136 = vmatprep.mubr.bf16.mxu0 0
  %137 = vmatmul.mubr.bf16.gmra.mxu0 %v102
  %v138 = vpop.f32.mrf.mxu0
  %v139 = vadd.f32 0.0, %v138
  %v140 = vpop.f32.mrf.mxu0
  %v141 = vpop.f32.mrf.mxu0
  %v142 = vadd.f32 0.0, %v141
  %v143 = vpop.f32.mrf.mxu0
  %144 = vdwg.mxu0
  %vm145 = vcmp.lt.f32.partialorder %v88, 0.5
  %vm146 = vcmp.lt.f32.partialorder %v91, 0.5
  %vm147 = vmand %vm35, %vm145
  %vm148 = vmand %vm36, %vm146
  %v149 = vsel %vm147, 1, 0
  %v150 = vsel %vm148, 1, 0
  %v151 = vcvt.s32.f32 %v149
  %v152 = vcvt.s32.f32 %v150
  %v153 = vpack.c.bf16 %v152, %v151
  %v154 = vld [vmem:[%s2] sm:$0xf]
  %v155 = vld [vmem:[%s2 + $0x4] sm:$0xf]
  %v158 = vunpack.c.l.b16 %v154
  %v159 = vunpack.c.l.b16 %v155
  %v160 = vpack.c.b16 %v159, %v158
  %v162 = vsel %vm49, %v160, 0
  %164 = vmatprep.subr.bf16.mxu0 0
  %165 = vmatpush1.bf16.msra.mxu0 0
  %166 = vmatprep.subr.bf16.mxu0 0
  %167 = vmatpush1.bf16.msra.mxu0 0
  %168 = vmatprep.subr.bf16.mxu0 0
  %169 = vmatpush1.bf16.msra.mxu0 0
  %170 = vmatprep.subr.bf16.mxu0 0
  %171 = vmatpush1.bf16.msra.mxu0 0
  %172 = vmatprep.subr.bf16.mxu0 0
  %173 = vmatpush1.bf16.msra.mxu0 0
  %174 = vmatprep.subr.bf16.mxu0 0
  %175 = vmatpush1.bf16.msra.mxu0 0
  %176 = vmatprep.subr.bf16.mxu0 0
  %177 = vmatpush1.bf16.msra.mxu0 0
  %178 = vmatprep.subr.bf16.mxu0 0
  %179 = vmatpush1.bf16.msra.mxu0 %v153
  %180 = vmatprep.subr.bf16.mxu0 0
  %181 = vmatpush2.bf16.msra.mxu0 0
  %182 = vmatprep.subr.bf16.mxu0 0
  %183 = vmatpush2.bf16.msra.mxu0 0
  %184 = vmatprep.subr.bf16.mxu0 0
  %185 = vmatpush2.bf16.msra.mxu0 0
  %186 = vmatprep.subr.bf16.mxu0 0
  %187 = vmatpush2.bf16.msra.mxu0 0
  %188 = vmatprep.subr.bf16.mxu0 0
  %189 = vmatpush2.bf16.msra.mxu0 0
  %190 = vmatprep.subr.bf16.mxu0 0
  %191 = vmatpush2.bf16.msra.mxu0 0
  %192 = vmatprep.subr.bf16.mxu0 0
  %193 = vmatpush2.bf16.msra.mxu0 0
  %194 = vmatprep.subr.bf16.mxu0 0
  %195 = vmatpush2.bf16.msra.mxu0 0
  %196 = vmatprep.mubr.bf16.mxu0 0
  %197 = vmatmul.mubr.bf16.gmra.mxu0 %v162
  %v198 = vpop.f32.mrf.mxu0
  %v199 = vadd.f32 0.0, %v198
  %v200 = vpop.f32.mrf.mxu0
  %v201 = vpop.f32.mrf.mxu0
  %v202 = vadd.f32 0.0, %v201
  %v203 = vpop.f32.mrf.mxu0
  %204 = vdwg.mxu0
  %205 = vst [vmem:[%s6 - $0x7] sm:$0x80] %v202
  %vm206 = vcmp.gt.f32.partialorder %v139, 0.5
  %vm207 = vcmp.gt.f32.partialorder %v142, 0.5
  %vm208 = vmxor %vm28, 1
  %vm209 = vmxor %vm29, 1
  %vm210 = vmor %vm206, %vm208
  %vm211 = vmor %vm207, %vm209
  %v212 = vsel %vm210, 0.0, 1.0
  %v213 = vsel %vm211, 0.0, 1.0
  %v214 = vadd.f32 %v212, %v213
  %v215 = vrot.slane %v214, 4
  %v216 = vadd.f32 %v214, %v215
  %v217 = vrot.slane %v216, 2
  %v218 = vadd.f32 %v216, %v217
  %v219 = vrot.slane %v218, 1
  %v220 = vadd.f32 %v218, %v219
  %v221 = vsel %vm35, %v26, 16.0
  %v222 = vsel %vm36, %v27, 16.0
  %v223 = vmin.f32 %v221, %v222
  %v224 = vrot.slane %v223, 4
  %v225 = vmin.f32 %v223, %v224
  %v226 = vrot.slane %v225, 2
  %v227 = vmin.f32 %v225, %v226
  %v228 = vrot.slane %v227, 1
  %v229 = vmin.f32 %v227, %v228
  %vm230 = vcmp.eq.f32.partialorder %v26, %v229
  %vm231 = vcmp.eq.f32.partialorder %v27, %v229
  %v232 = vsel %vm230, %v32, 0.0
  %v233 = vsel %vm231, %v33, 0.0
  %v234 = vadd.f32 %v232, %v233
  %v235 = vrot.slane %v234, 4
  %v236 = vadd.f32 %v234, %v235
  %v237 = vrot.slane %v236, 2
  %v238 = vadd.f32 %v236, %v237
  %v239 = vrot.slane %v238, 1
  %v240 = vadd.f32 %v238, %v239
  %v241 = vsel %vm210, -1e+30, %v32
  %v242 = vsel %vm211, -1e+30, %v33
  %v243 = vmax.f32 %v241, %v242
  %v244 = vrot.slane %v243, 4
  %v245 = vmax.f32 %v243, %v244
  %v246 = vrot.slane %v245, 2
  %v247 = vmax.f32 %v245, %v246
  %v248 = vrot.slane %v247, 1
  %v249 = vmax.f32 %v247, %v248
  %v250 = vmax.f32 %v32, %v33
  %v251 = vrot.slane %v250, 4
  %v252 = vmax.f32 %v250, %v251
  %v253 = vrot.slane %v252, 2
  %v254 = vmax.f32 %v252, %v253
  %v255 = vrot.slane %v254, 1
  %v256 = vmax.f32 %v254, %v255
  %vm257 = vcmp.eq.f32.partialorder %v32, %v256
  %vm258 = vcmp.eq.f32.partialorder %v33, %v256
  %v259 = vsel %vm257, %v26, 16.0
  %v260 = vsel %vm258, %v27, 16.0
  %v261 = vmin.f32 %v259, %v260
  %v262 = vrot.slane %v261, 4
  %v263 = vmin.f32 %v261, %v262
  %v264 = vrot.slane %v263, 2
  %v265 = vmin.f32 %v263, %v264
  %v266 = vrot.slane %v265, 1
  %v267 = vmin.f32 %v265, %v266
  %v268 = vsub.f32 %v267, 2.0
  %v269 = vmax.f32 %v268, 0.0
  %v270 = vadd.f32 %v267, 2.0
  %v271 = vmin.f32 %v270, 15.0
  %vm272 = vcmp.ge.f32.partialorder %v26, %v269
  %vm273 = vcmp.ge.f32.partialorder %v27, %v269
  %vm274 = vcmp.le.f32.partialorder %v26, %v271
  %vm275 = vcmp.le.f32.partialorder %v27, %v271
  %vm276 = vmand %vm272, %vm274
  %vm277 = vmand %vm273, %vm275
  %vm278 = vmor %vm210, %vm276
  %vm279 = vmor %vm211, %vm277
  %v280 = vsel %vm278, 0.0, 1.0
  %v281 = vsel %vm279, 0.0, 1.0
  %v282 = vadd.f32 %v280, %v281
  %v283 = vrot.slane %v282, 4
  %v284 = vadd.f32 %v282, %v283
  %v285 = vrot.slane %v284, 2
  %v286 = vadd.f32 %v284, %v285
  %v287 = vrot.slane %v286, 1
  %v288 = vadd.f32 %v286, %v287
  %v289 = vsel %vm278, -1e+30, %v32
  %v290 = vsel %vm279, -1e+30, %v33
  %v291 = vmax.f32 %v289, %v290
  %v292 = vrot.slane %v291, 4
  %v293 = vmax.f32 %v291, %v292
  %v294 = vrot.slane %v293, 2
  %v295 = vmax.f32 %v293, %v294
  %v296 = vrot.slane %v295, 1
  %v297 = vmax.f32 %v295, %v296
  %v298 = vsel %vm35, %v199, 0.0
  %v299 = vsel %vm36, %v202, 0.0
  %vm300 = vcmp.eq.f32.partialorder %v298, 1.0
  %vm301 = vcmp.eq.f32.partialorder %v299, 1.0
  %v302 = vsel %vm300, %v32, -1e+30
  %v303 = vsel %vm301, %v33, -1e+30
  %v304 = vmax.f32 %v302, %v303
  %v305 = vrot.slane %v304, 4
  %v306 = vmax.f32 %v304, %v305
  %v307 = vrot.slane %v306, 2
  %v308 = vmax.f32 %v306, %v307
  %v309 = vrot.slane %v308, 1
  %v310 = vmax.f32 %v308, %v309
  %vm311 = vcmp.lt.f32.partialorder %v310, -1e+29
  %v312 = vsel %vm311, 1e+30, %v310
  %vm313 = vcmp.eq.s32.totalorder %v24, 0
  %v314 = vsel %vm313, %v312, 1e+30
  %vm315 = vcmp.eq.f32.partialorder %v298, 2.0
  %vm316 = vcmp.eq.f32.partialorder %v299, 2.0
  %v317 = vsel %vm315, %v32, -1e+30
  %v318 = vsel %vm316, %v33, -1e+30
  %v319 = vmax.f32 %v317, %v318
  %v320 = vrot.slane %v319, 4
  %v321 = vmax.f32 %v319, %v320
  %v322 = vrot.slane %v321, 2
  %v323 = vmax.f32 %v321, %v322
  %v324 = vrot.slane %v323, 1
  %v325 = vmax.f32 %v323, %v324
  %vm326 = vcmp.lt.f32.partialorder %v325, -1e+29
  %v327 = vsel %vm326, 1e+30, %v325
  %vm328 = vcmp.eq.s32.totalorder %v24, 1
  %v329 = vsel %vm328, %v327, %v314
  %vm330 = vcmp.eq.f32.partialorder %v298, 3.0
  %vm331 = vcmp.eq.f32.partialorder %v299, 3.0
  %v332 = vsel %vm330, %v32, -1e+30
  %v333 = vsel %vm331, %v33, -1e+30
  %v334 = vmax.f32 %v332, %v333
  %v335 = vrot.slane %v334, 4
  %v336 = vmax.f32 %v334, %v335
  %v337 = vrot.slane %v336, 2
  %v338 = vmax.f32 %v336, %v337
  %v339 = vrot.slane %v338, 1
  %v340 = vmax.f32 %v338, %v339
  %vm341 = vcmp.lt.f32.partialorder %v340, -1e+29
  %v342 = vsel %vm341, 1e+30, %v340
  %vm343 = vcmp.eq.s32.totalorder %v24, 2
  %v344 = vsel %vm343, %v342, %v329
  %vm345 = vcmp.eq.f32.partialorder %v298, 4.0
  %vm346 = vcmp.eq.f32.partialorder %v299, 4.0
  %v347 = vsel %vm345, %v32, -1e+30
  %v348 = vsel %vm346, %v33, -1e+30
  %v349 = vmax.f32 %v347, %v348
  %v350 = vrot.slane %v349, 4
  %v351 = vmax.f32 %v349, %v350
  %v352 = vrot.slane %v351, 2
  %v353 = vmax.f32 %v351, %v352
  %v354 = vrot.slane %v353, 1
  %v355 = vmax.f32 %v353, %v354
  %vm356 = vcmp.lt.f32.partialorder %v355, -1e+29
  %v357 = vsel %vm356, 1e+30, %v355
  %vm358 = vcmp.eq.s32.totalorder %v24, 3
  %v359 = vsel %vm358, %v357, %v344
  %v361 = vcombine.high %v202, %v202
  %v363 = vunpack.c.l.s4 1966171168
  %v364 = vunpack.c.0.s8 %v363
  %v365 = vlaneseq
  %v366 = vshrl.u32 %v365, 7
  %v367 = vsub.s32 %v364, %v366
  %v368 = vrot.slane %v361, %v367
  %v369 = vcombine.high %v368, %v368
  %v371 = vunpack.c.l.s4 1966171168
  %v372 = vunpack.c.0.s8 %v371
  %v373 = vlaneseq
  %v374 = vshrl.u32 %v373, 7
  %v375 = vsub.s32 %v372, %v374
  %v376 = vrot.slane %v369, %v375
  %v377 = vcombine.high %v376, %v376
  %v379 = vsub.f32 %v34, %v377
  %v380 = vfloor.f32 %v379
  %vm381 = vcmp.gt.f32.partialorder %v379, 0.0
  %v382 = vsel %vm381, %v379, 1.0
  %vm383 = vcmp.lt.f32.partialorder %v288, 0.5
  %v384 = vsel %vm383, %v240, %v297
  %vm385 = vcmp.gt.f32.partialorder %v380, 0.5
  %v386 = vsub.f32 %v380, 1.0
  %v387 = vmul.f32 %v386, %v384
  %v388 = vadd.f32 %v249, %v387
  %v389 = vsel %vm385, %v388, 0.0
  %vm390 = vcmp.lt.f32.partialorder %v220, 0.5
  %v391 = vsub.f32 0.0, %v389
  %v392 = vrcp.pop %v382
  %v393 = vmul.f32 %v391, %v392
  %v394 = vsel %vm390, %v240, %v393
  %v395 = vsel %vm381, %v394, 0.0
  %v397 = vlaneseq
  %v398 = vshrl.u32 %v397, 7
  %v399 = vsub.s32 0, %v398
  %v400 = vrot.slane %v34, %v399
  %v402 = vsub.f32 %v202, %v400
  %v403 = vfloor.f32 %v402
  %vm404 = vcmp.gt.f32.partialorder %v402, 0.0
  %v405 = vsel %vm404, %v402, 1.0
  %v406 = vlaneseq
  %v407 = vshrl.u32 %v406, 7
  %v408 = vsub.s32 0, %v407
  %v409 = vrot.slane %v359, %v408
  %vm410 = vcmp.lt.f32.partialorder %v409, %v359
  %vm411 = vcmp.eq.f32.partialorder %v409, %v359
  %vm412 = vcmp.gt.s32.totalorder %v24, 0
  %vm413 = vmand %vm411, %vm412
  %vm414 = vmor %vm410, %vm413
  %v415 = vsel %vm414, 1, 0
  %v416 = vcvt.s32.f32 %v415
  %v417 = vadd.f32 %v416, 0.0
  %v418 = vlaneseq
  %v419 = vshrl.u32 %v418, 7
  %v420 = vsub.s32 1, %v419
  %v421 = vrot.slane %v359, %v420
  %vm422 = vcmp.lt.f32.partialorder %v421, %v359
  %vm423 = vcmp.eq.f32.partialorder %v421, %v359
  %vm424 = vcmp.gt.s32.totalorder %v24, 1
  %vm425 = vmand %vm423, %vm424
  %vm426 = vmor %vm422, %vm425
  %v427 = vsel %vm426, 1, 0
  %v428 = vcvt.s32.f32 %v427
  %v429 = vadd.f32 %v417, %v428
  %v430 = vlaneseq
  %v431 = vshrl.u32 %v430, 7
  %v432 = vsub.s32 2, %v431
  %v433 = vrot.slane %v359, %v432
  %vm434 = vcmp.lt.f32.partialorder %v433, %v359
  %vm435 = vcmp.eq.f32.partialorder %v433, %v359
  %vm436 = vcmp.gt.s32.totalorder %v24, 2
  %vm437 = vmand %vm435, %vm436
  %vm438 = vmor %vm434, %vm437
  %v439 = vsel %vm438, 1, 0
  %v440 = vcvt.s32.f32 %v439
  %v441 = vadd.f32 %v429, %v440
  %v442 = vlaneseq
  %v443 = vshrl.u32 %v442, 7
  %v444 = vsub.s32 3, %v443
  %v445 = vrot.slane %v359, %v444
  %vm446 = vcmp.lt.f32.partialorder %v445, %v359
  %vm447 = vcmp.eq.f32.partialorder %v445, %v359
  %vm448 = vcmp.gt.s32.totalorder %v24, 3
  %vm449 = vmand %vm447, %vm448
  %vm450 = vmor %vm446, %vm449
  %v451 = vsel %vm450, 1, 0
  %v452 = vcvt.s32.f32 %v451
  %v453 = vadd.f32 %v441, %v452
  %v454 = vsub.f32 %v403, 0.5
  %v455 = vlaneseq
  %v456 = vshrl.u32 %v455, 7
  %v457 = vsub.s32 7, %v456
  %v458 = vrot.slane %v454, %v457
  %vm459 = vcmp.lt.f32.partialorder %v453, %v458
  %vm460 = vcmp.lt.f32.partialorder %v359, 1e+29
  %vm461 = vmand %vm459, %vm460
  %v462 = vsel %vm461, %v359, 0.0
  %v463 = vrot.slane %v462, 4
  %v464 = vadd.f32 %v462, %v463
  %v465 = vrot.slane %v464, 2
  %v466 = vadd.f32 %v464, %v465
  %v467 = vrot.slane %v466, 1
  %v468 = vadd.f32 %v466, %v467
  %v469 = vrcp.pop %v405
  %v470 = vmul.f32 %v468, %v469
  %v471 = vsel %vm404, %v470, 0.0
  %v473 = vcombine.high %v471, %v471
  %v475 = vunpack.c.l.s4 1966171168
  %v476 = vunpack.c.0.s8 %v475
  %v477 = vlaneseq
  %v478 = vshrl.u32 %v477, 7
  %v479 = vsub.s32 %v476, %v478
  %v480 = vrot.slane %v473, %v479
  %v481 = vcombine.high %v480, %v480
  %v483 = vunpack.c.l.s4 1966171168
  %v484 = vunpack.c.0.s8 %v483
  %v485 = vlaneseq
  %v486 = vshrl.u32 %v485, 7
  %v487 = vsub.s32 %v484, %v486
  %v488 = vrot.slane %v481, %v487
  %v489 = vcombine.high %v488, %v488
  %v491 = vadd.f32 %v395, %v489
  %492 = vst [vmem:[%s5] sm:$0x1] %v491
  // Predicated region
  $region22: #{atca_tca_loss.1} parent=0 // pred_check
    _
  $region23: #{atca_tca_loss.1} parent=0 // pred_check_branch
    %494 = sbr.rel (0) target = $region25
  $region24: #{atca_tca_loss.1} parent=0 // pred_region
    _
  $region25: #{atca_tca_loss.1} parent=0 // pred_fallthru
    _
  // Predicated region
  $region26: #{atca_tca_loss.1} parent=0 // pred_check
    _
  $region27: #{atca_tca_loss.1} parent=0 // pred_check_branch
    %496 = sbr.rel (0) target = $region29
  $region28: #{atca_tca_loss.1} parent=0 // pred_region
    _
  $region29: #{atca_tca_loss.1} parent=0 // pred_fallthru
    _
  // Predicated region
  $region30: #{atca_tca_loss.1} parent=0 // pred_check
    _
  $region31: #{atca_tca_loss.1} parent=0 // pred_check_branch
    %498 = sbr.rel (0) target = $region33
  $region32: #{atca_tca_loss.1} parent=0 // pred_region
    _
  $region33: #{atca_tca_loss.1} parent=0 // pred_fallthru
    _
  // Predicated region
  $region34: #{atca_tca_loss.1} parent=0 // pred_check
    _
  $region35: #{atca_tca_loss.1} parent=0 // pred_check_branch
    %500 = sbr.rel (0) target = $region37
  $region36: #{atca_tca_loss.1} parent=0 // pred_region
    _
  $region37: #{atca_tca_loss.1} parent=0 // pred_fallthru
    _

</llo_original>
